<compile_context>
chip_gen: v5e
topology: v5e:2x2
jax: 0.10.0
libtpu: 0.0.40
codegen_flags: <defaults>
</compile_context>

<pallas_src>
import jax
import jax.numpy as jnp
from jax.experimental import pallas as pl
from jax.experimental.pallas import tpu as pltpu

IN_DIM = 178
H1 = 512
H2 = 256
OUT_DIM = 5

OUT_PAD = 8      # 5 -> 8 (sublane-rounded; trailing cols sliced off by caller)
TB_MAX = 1024    # max batch-tile rows per grid step


def _round_up(n, m):
    return ((n + m - 1) // m) * m


def mlp_kernel(x_ref, w1_ref, b1_ref, w2_ref, b2_ref, w3_ref, b3_ref, o_ref):
    # Dropout layers are identity in eval mode.
    x = x_ref[...].astype(jnp.bfloat16)          # cast in-kernel, no extra HBM pass

    # fc1 + relu : [TB,178] x [178,512] -> [TB,512]   (f32 accumulation)
    h1 = jnp.dot(x, w1_ref[...], preferred_element_type=jnp.float32)
    h1 = jnp.maximum(h1 + b1_ref[...], 0.0)

    # fc2 + relu : [TB,512] x [512,256] -> [TB,256]
    h2 = jnp.dot(h1.astype(jnp.bfloat16), w2_ref[...],
                 preferred_element_type=jnp.float32)
    h2 = jnp.maximum(h2 + b2_ref[...], 0.0)

    # fc3 (no activation) : [TB,256] x [256,8] -> [TB,8]
    out = jnp.dot(h2.astype(jnp.bfloat16), w3_ref[...],
                  preferred_element_type=jnp.float32)
    o_ref[...] = (out + b3_ref[...]).astype(o_ref.dtype)


def prepare_params(w1, b1, w2, b2, w3, b3):
    """One-time weight prep (pad + bf16 cast). Cache the result; do NOT re-run
    this per forward call."""
    w1_p = w1.astype(jnp.bfloat16)                                        # (178, 512)
    w2_p = w2.astype(jnp.bfloat16)                                        # (512, 256)
    w3_p = jnp.pad(w3, ((0, 0), (0, OUT_PAD - OUT_DIM))).astype(jnp.bfloat16)  # (256, 8)
    b1_p = b1.astype(jnp.float32)                                         # (1, 512)
    b2_p = b2.astype(jnp.float32)                                         # (1, 256)
    b3_p = jnp.pad(b3, ((0, 0), (0, OUT_PAD - OUT_DIM))).astype(jnp.float32)   # (1, 8)
    return w1_p, b1_p, w2_p, b2_p, w3_p, b3_p


def my_mlp_forward(x, params):
    """x: [B, 178] float32, params: output of prepare_params -> [B, 5] float32."""
    w1_p, b1_p, w2_p, b2_p, w3_p, b3_p = params
    B = x.shape[0]

    # Batch tile: cap at TB_MAX; when B is modest keep >= 2 grid steps so the
    # "parallel" batch axis can be sharded across both v7x TensorCores.
    if B >= 2 * TB_MAX:
        TB = TB_MAX
    elif B > 8:
        TB = _round_up((B + 1) // 2, 8)
    else:
        TB = _round_up(max(B, 1), 8)
    B_pad = _round_up(B, TB)
    grid = (B_pad // TB,)

    # Only the batch dim is padded (feature dim stays 178: block last dim ==
    # full array dim is legal) -> no wrapper-side feature pad / bf16 cast pass.
    x_p = x if B_pad == B else jnp.pad(x, ((0, B_pad - B), (0, 0)))

    def resident(shape):
        # Constant index_map -> fetched once, stays resident in VMEM; single
        # buffer because double-buffering a constant block only wastes VMEM.
        return pl.BlockSpec(shape, lambda i: (0, 0),
                            pipeline_mode=pl.Buffered(1))

    flops = 2 * B_pad * (IN_DIM * H1 + H1 * H2 + H2 * OUT_PAD)
    bytes_accessed = (
        x_p.size * x_p.dtype.itemsize
        + B_pad * OUT_PAD * 4
        + sum(int(p.size) * p.dtype.itemsize for p in params))
    cost = pl.CostEstimate(flops=flops, transcendentals=0,
                           bytes_accessed=bytes_accessed)

    out_padded = pl.pallas_call(
        mlp_kernel,
        out_shape=jax.ShapeDtypeStruct((B_pad, OUT_PAD), jnp.float32),
        grid=grid,
        in_specs=[
            pl.BlockSpec((TB, IN_DIM), lambda i: (i, 0)),   # x tile (pipelined)
            resident(w1_p.shape),
            resident(b1_p.shape),
            resident(w2_p.shape),
            resident(b2_p.shape),
            resident(w3_p.shape),
            resident(b3_p.shape),
        ],
        out_specs=pl.BlockSpec((TB, OUT_PAD), lambda i: (i, 0)),
        compiler_params=pltpu.CompilerParams(
            dimension_semantics=("parallel",),
            vmem_limit_bytes=32 << 20,
        ),
        cost_estimate=cost,
    )(x_p, w1_p, b1_p, w2_p, b2_p, w3_p, b3_p)

    # Padded rows carry bias-propagated garbage and the last 3 columns are
    # padding -> the slice is required for correctness.
    return out_padded[:B, :OUT_DIM]


def init_params(key):
    """Deterministic init mimicking nn.Linear's uniform(-1/sqrt(fan_in), +)."""
    ks = jax.random.split(key, 6)

    def linear(kw, kb, fan_in, fan_out):
        bound = 1.0 / jnp.sqrt(jnp.float32(fan_in))
        w = jax.random.uniform(kw, (fan_in, fan_out), jnp.float32, -bound, bound)
        b = jax.random.uniform(kb, (1, fan_out), jnp.float32, -bound, bound)
        return w, b

    w1, b1 = linear(ks[0], ks[1], IN_DIM, H1)
    w2, b2 = linear(ks[2], ks[3], H1, H2)
    w3, b3 = linear(ks[4], ks[5], H2, OUT_DIM)
    return w1, b1, w2, b2, w3, b3


if __name__ == "__main__":
    key = jax.random.PRNGKey(0)
    k_x, k_p = jax.random.split(key)

    B = 8
    x = jax.random.normal(k_x, (B, IN_DIM), jnp.float32)
    w1, b1, w2, b2, w3, b3 = init_params(k_p)

    params = prepare_params(w1, b1, w2, b2, w3, b3)   # cached weight prep
    out = my_mlp_forward(x, params)
    out = jax.block_until_ready(out)

    # Reference in plain JAX using the same bf16-input / f32-accumulate recipe
    # (eval-mode dropout == identity).
    xb = x.astype(jnp.bfloat16)
    h = jnp.dot(xb, w1.astype(jnp.bfloat16), preferred_element_type=jnp.float32)
    h = jnp.maximum(h + b1, 0.0)
    h = jnp.dot(h.astype(jnp.bfloat16), w2.astype(jnp.bfloat16),
                preferred_element_type=jnp.float32)
    h = jnp.maximum(h + b2, 0.0)
    ref = jnp.dot(h.astype(jnp.bfloat16), w3.astype(jnp.bfloat16),
                  preferred_element_type=jnp.float32) + b3

    assert out.shape == (B, OUT_DIM)
    assert jnp.allclose(out, ref, atol=1e-2, rtol=1e-2), (
        float(jnp.max(jnp.abs(out - ref))))

    print("KERNEL_OK")
</pallas_src>

<mosaic_0001>
module attributes {stable_mosaic.version = 11 : i64} {
  func.func @mlp_kernel(%arg0: i32, %arg1: memref<8x178xf32, #tpu.memory_space<vmem>>, %arg2: memref<178x512xbf16, #tpu.memory_space<vmem>>, %arg3: memref<1x512xf32, #tpu.memory_space<vmem>>, %arg4: memref<512x256xbf16, #tpu.memory_space<vmem>>, %arg5: memref<1x256xf32, #tpu.memory_space<vmem>>, %arg6: memref<256x8xbf16, #tpu.memory_space<vmem>>, %arg7: memref<1x8xf32, #tpu.memory_space<vmem>>, %arg8: memref<8x8xf32, #tpu.memory_space<vmem>>) attributes {dimension_semantics = [#tpu.dimension_semantics<parallel>], iteration_bounds = array<i64: 1>, scalar_prefetch = 0 : i64, scratch_operands = 0 : i64, tpu.core_type = #tpu.core_type<tc>, window_params = [{transform_indices = @transform_0, window_bounds = array<i64: 8, 178>}, {pipeline_mode = #tpu.pipeline_mode<synchronous>, transform_indices = @transform_1, window_bounds = array<i64: 178, 512>}, {pipeline_mode = #tpu.pipeline_mode<synchronous>, transform_indices = @transform_2, window_bounds = array<i64: 1, 512>}, {pipeline_mode = #tpu.pipeline_mode<synchronous>, transform_indices = @transform_3, window_bounds = array<i64: 512, 256>}, {pipeline_mode = #tpu.pipeline_mode<synchronous>, transform_indices = @transform_4, window_bounds = array<i64: 1, 256>}, {pipeline_mode = #tpu.pipeline_mode<synchronous>, transform_indices = @transform_5, window_bounds = array<i64: 256, 8>}, {pipeline_mode = #tpu.pipeline_mode<synchronous>, transform_indices = @transform_6, window_bounds = array<i64: 1, 8>}, {transform_indices = @transform_7, window_bounds = array<i64: 8, 8>}]} {
    %c0 = arith.constant 0 : index
    %c0_0 = arith.constant 0 : index
    %0 = vector.load %arg1[%c0, %c0_0] : memref<8x178xf32, #tpu.memory_space<vmem>>, vector<8x178xf32>
    %1 = arith.truncf %0 : vector<8x178xf32> to vector<8x178xbf16>
    %c0_1 = arith.constant 0 : index
    %c0_2 = arith.constant 0 : index
    %2 = vector.load %arg2[%c0_1, %c0_2] : memref<178x512xbf16, #tpu.memory_space<vmem>>, vector<178x512xbf16>
    %cst = arith.constant dense<0.000000e+00> : vector<8x512xf32>
    %3 = tpu.matmul %1, %2, %cst {dimension_numbers = #tpu.dot_dimension_numbers<[1], [0], [0], [1], [0, 0, 1, 1], [], []>} : vector<8x178xbf16>, vector<178x512xbf16>, vector<8x512xf32> -> vector<8x512xf32>
    %c0_3 = arith.constant 0 : index
    %c0_4 = arith.constant 0 : index
    %4 = vector.load %arg3[%c0_3, %c0_4] : memref<1x512xf32, #tpu.memory_space<vmem>>, vector<1x512xf32>
    %5 = vector.broadcast %4 : vector<1x512xf32> to vector<8x512xf32>
    %6 = arith.addf %3, %5 : vector<8x512xf32>
    %cst_5 = arith.constant 0.000000e+00 : f32
    %7 = vector.broadcast %cst_5 : f32 to vector<8x512xf32>
    %8 = arith.maximumf %6, %7 : vector<8x512xf32>
    %9 = arith.truncf %8 : vector<8x512xf32> to vector<8x512xbf16>
    %c0_6 = arith.constant 0 : index
    %c0_7 = arith.constant 0 : index
    %10 = vector.load %arg4[%c0_6, %c0_7] : memref<512x256xbf16, #tpu.memory_space<vmem>>, vector<512x256xbf16>
    %cst_8 = arith.constant dense<0.000000e+00> : vector<8x256xf32>
    %11 = tpu.matmul %9, %10, %cst_8 {dimension_numbers = #tpu.dot_dimension_numbers<[1], [0], [0], [1], [0, 0, 1, 1], [], []>} : vector<8x512xbf16>, vector<512x256xbf16>, vector<8x256xf32> -> vector<8x256xf32>
    %c0_9 = arith.constant 0 : index
    %c0_10 = arith.constant 0 : index
    %12 = vector.load %arg5[%c0_9, %c0_10] : memref<1x256xf32, #tpu.memory_space<vmem>>, vector<1x256xf32>
    %13 = vector.broadcast %12 : vector<1x256xf32> to vector<8x256xf32>
    %14 = arith.addf %11, %13 : vector<8x256xf32>
    %cst_11 = arith.constant 0.000000e+00 : f32
    %15 = vector.broadcast %cst_11 : f32 to vector<8x256xf32>
    %16 = arith.maximumf %14, %15 : vector<8x256xf32>
    %17 = arith.truncf %16 : vector<8x256xf32> to vector<8x256xbf16>
    %c0_12 = arith.constant 0 : index
    %c0_13 = arith.constant 0 : index
    %18 = vector.load %arg6[%c0_12, %c0_13] : memref<256x8xbf16, #tpu.memory_space<vmem>>, vector<256x8xbf16>
    %cst_14 = arith.constant dense<0.000000e+00> : vector<8x8xf32>
    %19 = tpu.matmul %17, %18, %cst_14 {dimension_numbers = #tpu.dot_dimension_numbers<[1], [0], [0], [1], [0, 0, 1, 1], [], []>} : vector<8x256xbf16>, vector<256x8xbf16>, vector<8x8xf32> -> vector<8x8xf32>
    %c0_15 = arith.constant 0 : index
    %c0_16 = arith.constant 0 : index
    %20 = vector.load %arg7[%c0_15, %c0_16] : memref<1x8xf32, #tpu.memory_space<vmem>>, vector<1x8xf32>
    %21 = vector.broadcast %20 : vector<1x8xf32> to vector<8x8xf32>
    %22 = arith.addf %19, %21 : vector<8x8xf32>
    %c0_17 = arith.constant 0 : index
    %c0_18 = arith.constant 0 : index
    %23 = vector.load %arg8[%c0_17, %c0_18] : memref<8x8xf32, #tpu.memory_space<vmem>>, vector<8x8xf32>
    tpu.vector_store %arg8[%c0_17, %c0_18], %22 {strides = array<i32>} : memref<8x8xf32, #tpu.memory_space<vmem>>, vector<8x8xf32>,
    return
  }
  func.func @transform_0(%arg0: i32) -> (i32, i32) {
    %c0_i32 = arith.constant 0 : i32
    %c0_i32_0 = arith.constant 0 : i32
    return %arg0, %c0_i32 : i32, i32
  }
  func.func @transform_1(%arg0: i32) -> (i32, i32) {
    %c0_i32 = arith.constant 0 : i32
    %c0_i32_0 = arith.constant 0 : i32
    %c0_i32_1 = arith.constant 0 : i32
    return %c0_i32, %c0_i32_0 : i32, i32
  }
  func.func @transform_2(%arg0: i32) -> (i32, i32) {
    %c0_i32 = arith.constant 0 : i32
    %c0_i32_0 = arith.constant 0 : i32
    %c0_i32_1 = arith.constant 0 : i32
    return %c0_i32, %c0_i32_0 : i32, i32
  }
  func.func @transform_3(%arg0: i32) -> (i32, i32) {
    %c0_i32 = arith.constant 0 : i32
    %c0_i32_0 = arith.constant 0 : i32
    %c0_i32_1 = arith.constant 0 : i32
    return %c0_i32, %c0_i32_0 : i32, i32
  }
  func.func @transform_4(%arg0: i32) -> (i32, i32) {
    %c0_i32 = arith.constant 0 : i32
    %c0_i32_0 = arith.constant 0 : i32
    %c0_i32_1 = arith.constant 0 : i32
    return %c0_i32, %c0_i32_0 : i32, i32
  }
  func.func @transform_5(%arg0: i32) -> (i32, i32) {
    %c0_i32 = arith.constant 0 : i32
    %c0_i32_0 = arith.constant 0 : i32
    %c0_i32_1 = arith.constant 0 : i32
    return %c0_i32, %c0_i32_0 : i32, i32
  }
  func.func @transform_6(%arg0: i32) -> (i32, i32) {
    %c0_i32 = arith.constant 0 : i32
    %c0_i32_0 = arith.constant 0 : i32
    %c0_i32_1 = arith.constant 0 : i32
    return %c0_i32, %c0_i32_0 : i32, i32
  }
  func.func @transform_7(%arg0: i32) -> (i32, i32) {
    %c0_i32 = arith.constant 0 : i32
    %c0_i32_0 = arith.constant 0 : i32
    return %arg0, %c0_i32 : i32, i32
  }
}

</mosaic_0001>

<llo_original>
// kernel: tpu_custom_call.1
$region0: #{tpu_custom_call.1}
  #allocation0 [shape = 'u32[]', space=smem, size = 0x4, offset = 0x4, fixed_abs, tag = 'smem constant byte address 0x4 - core index']
  #allocation1 [shape = 'u32[72,128]{1,0:T(1,128)}', space=vmem, size = 0x9000, scoped, tag = 'internal scratch']
  %s0 = inlined_call_operand.vmem [shape: f32[8,178], index: 0, kind: input, shape index: {}]
  %s1 = inlined_call_operand.hbm [shape: bf16[178,512], index: 1, kind: input, shape index: {}]
  %s2 = inlined_call_operand.vmem [shape: f32[1,512], index: 2, kind: input, shape index: {}]
  %s3 = inlined_call_operand.hbm [shape: bf16[512,256], index: 3, kind: input, shape index: {}]
  %s4 = inlined_call_operand.vmem [shape: f32[1,256], index: 4, kind: input, shape index: {}]
  %s5 = inlined_call_operand.vmem [shape: bf16[256,8], index: 5, kind: input, shape index: {}]
  %s6 = inlined_call_operand.vmem [shape: f32[1,8], index: 6, kind: input, shape index: {}]
  %s7 = inlined_call_operand.hbm [shape: f32[8,8], index: 7, kind: output, shape index: {}]
  %s8 = sld [smem:[#allocation0]]
  $region46: #{tpu_custom_call.1} parent=0
    _
  %s10 = ssub.s32 1, %s8
  %s11 = scalar_select 0, %s10, %s8
  $region1: #{tpu_custom_call.1} parent=0
    #allocation2 [shape = 'u8[188416]{0}', space=vmem, size = 0x2e000, scoped, tag = 'input window, operand 1, single buffered']
    #allocation3 [shape = 's32[1]{0}', space=sflag, size = 0x4, scoped, tag = 'scoped memory for tpu_custom_call.1']
    #allocation4 [shape = 's32[1]{0}', space=sflag, size = 0x4, scoped, tag = 'scoped memory for tpu_custom_call.1']
    #allocation5 [shape = 'u8[262144]{0}', space=vmem, size = 0x40000, scoped, tag = 'input window, operand 3, single buffered']
    #allocation6 [shape = 's32[1]{0}', space=sflag, size = 0x4, scoped, tag = 'scoped memory for tpu_custom_call.1']
    #allocation7 [shape = 'u8[4096]{0}', space=vmem, size = 0x1000, scoped, tag = 'output window, operand 0, single buffered']
    %12 = vsyncpa [#allocation3], 0
    %13 = vsyncpa [#allocation6], 0
    %14 = vsyncpa [#allocation4], 0
    // Predicated region
    $region2: #{tpu_custom_call.1} parent=1 // pred_check
      _
    $region3: #{tpu_custom_call.1} parent=1 // pred_check_branch
      %16 = sbr.rel (0) target = $region5
    $region4: #{tpu_custom_call.1} parent=1 // pred_region
      _
    $region5: #{tpu_custom_call.1} parent=1 // pred_fallthru
      _
    // Predicated region
    $region6: #{tpu_custom_call.1} parent=1 // pred_check
      _
    $region7: #{tpu_custom_call.1} parent=1 // pred_check_branch
      %18 = sbr.rel (0) target = $region9
    $region8: #{tpu_custom_call.1} parent=1 // pred_region
      %20 = vsyncadd [#allocation3], 0
      %s21 = sshll.u32 %s1, 4
      %s22 = int_to_ptr.hbm [resolvable:$true] %s21
      %s23 = sshll.u32 [#allocation2], 4
      %s24 = int_to_ptr.vmem [resolvable:$true] %s23
      %29 = dma.hbm_to_vmem [thread:$0]  %s22, 5888, %s24, [#allocation3], 256, 256, 16
    $region9: #{tpu_custom_call.1} parent=1 // pred_fallthru
      _
    // Predicated region
    $region10: #{tpu_custom_call.1} parent=1 // pred_check
      _
    $region11: #{tpu_custom_call.1} parent=1 // pred_check_branch
      %31 = sbr.rel (0) target = $region13
    $region12: #{tpu_custom_call.1} parent=1 // pred_region
      _
    $region13: #{tpu_custom_call.1} parent=1 // pred_fallthru
      _
    // Predicated region
    $region14: #{tpu_custom_call.1} parent=1 // pred_check
      _
    $region15: #{tpu_custom_call.1} parent=1 // pred_check_branch
      %33 = sbr.rel (0) target = $region17
    $region16: #{tpu_custom_call.1} parent=1 // pred_region
      %35 = vsyncadd [#allocation6], 0
      %s36 = sshll.u32 %s3, 4
      %s37 = int_to_ptr.hbm [resolvable:$true] %s36
      %s38 = sshll.u32 [#allocation5], 4
      %s39 = int_to_ptr.vmem [resolvable:$true] %s38
      %44 = dma.hbm_to_vmem [thread:$0]  %s37, 8192, %s39, [#allocation6], 128, 128, 8
    $region17: #{tpu_custom_call.1} parent=1 // pred_fallthru
      _
    // Predicated region
    $region18: #{tpu_custom_call.1} parent=1 // pred_check
      _
    $region19: #{tpu_custom_call.1} parent=1 // pred_check_branch
      %46 = sbr.rel (0) target = $region21
    $region20: #{tpu_custom_call.1} parent=1 // pred_region
      _
    $region21: #{tpu_custom_call.1} parent=1 // pred_fallthru
      _
    // Predicated region
    $region22: #{tpu_custom_call.1} parent=1 // pred_check
      _
    $region23: #{tpu_custom_call.1} parent=1 // pred_check_branch
      %48 = sbr.rel (0) target = $region25
    $region24: #{tpu_custom_call.1} parent=1 // pred_region
      _
    $region25: #{tpu_custom_call.1} parent=1 // pred_fallthru
      _
    // Predicated region
    $region26: #{tpu_custom_call.1} parent=1 // pred_check
      _
    $region27: #{tpu_custom_call.1} parent=1 // pred_check_branch
      %50 = sbr.rel (0) target = $region29
    $region28: #{tpu_custom_call.1} parent=1 // pred_region
      _
    $region29: #{tpu_custom_call.1} parent=1 // pred_fallthru
      _
    // Predicated region
    $region30: #{tpu_custom_call.1} parent=1 // pred_check
      _
    $region31: #{tpu_custom_call.1} parent=1 // pred_check_branch
      %52 = sbr.rel (0) target = $region33
    $region32: #{tpu_custom_call.1} parent=1 // pred_region
      %54 = dma.done [#allocation3], 5888
    $region33: #{tpu_custom_call.1} parent=1 // pred_fallthru
      _
    // Predicated region
    $region34: #{tpu_custom_call.1} parent=1 // pred_check
      _
    $region35: #{tpu_custom_call.1} parent=1 // pred_check_branch
      %56 = sbr.rel (0) target = $region37
    $region36: #{tpu_custom_call.1} parent=1 // pred_region
      %58 = dma.done [#allocation6], 8192
    $region37: #{tpu_custom_call.1} parent=1 // pred_fallthru
      _
    %v60 = vld [vmem:[%s0] sm:$0xff]
    %v61 = vld [vmem:[%s0 + $0x8] sm:$0xff]
    %v62 = vpack.c.bf16 %v60, %v60
    %v63 = vpack.c.bf16 %v61, %v61
    %v64 = vld [vmem:[#allocation2] sm:$0xff]
    %v65 = vld [vmem:[#allocation2 + $0x8] sm:$0xff]
    %v66 = vld [vmem:[#allocation2 + $0x10] sm:$0xff]
    %v67 = vld [vmem:[#allocation2 + $0x18] sm:$0xff]
    %v68 = vld [vmem:[#allocation2 + $0x20] sm:$0xff]
    %v69 = vld [vmem:[#allocation2 + $0x28] sm:$0xff]
    %v70 = vld [vmem:[#allocation2 + $0x30] sm:$0xff]
    %v71 = vld [vmem:[#allocation2 + $0x38] sm:$0xff]
    %v72 = vld [vmem:[#allocation2 + $0x40] sm:$0xff]
    %v73 = vld [vmem:[#allocation2 + $0x48] sm:$0xff]
    %v74 = vld [vmem:[#allocation2 + $0x50] sm:$0xff]
    %v75 = vld [vmem:[#allocation2 + $0x58] sm:$0xff]
    %v76 = vld [vmem:[#allocation2 + $0x60] sm:$0xff]
    %v77 = vld [vmem:[#allocation2 + $0x68] sm:$0xff]
    %v78 = vld [vmem:[#allocation2 + $0x70] sm:$0xff]
    %v79 = vld [vmem:[#allocation2 + $0x78] sm:$0xff]
    %v80 = vld [vmem:[#allocation2 + $0x80] sm:$0xff]
    %v81 = vld [vmem:[#allocation2 + $0x88] sm:$0xff]
    %v82 = vld [vmem:[#allocation2 + $0x90] sm:$0xff]
    %v83 = vld [vmem:[#allocation2 + $0x98] sm:$0xff]
    %v84 = vld [vmem:[#allocation2 + $0xa0] sm:$0xff]
    %v85 = vld [vmem:[#allocation2 + $0xa8] sm:$0xff]
    %v86 = vld [vmem:[#allocation2 + $0xb0] sm:$0xff]
    %v87 = vld [vmem:[#allocation2 + $0xb8] sm:$0xff]
    %v88 = vld [vmem:[#allocation2 + $0xc0] sm:$0xff]
    %v89 = vld [vmem:[#allocation2 + $0xc8] sm:$0xff]
    %v90 = vld [vmem:[#allocation2 + $0xd0] sm:$0xff]
    %v91 = vld [vmem:[#allocation2 + $0xd8] sm:$0xff]
    %v92 = vld [vmem:[#allocation2 + $0xe0] sm:$0xff]
    %v93 = vld [vmem:[#allocation2 + $0xe8] sm:$0xff]
    %v94 = vld [vmem:[#allocation2 + $0xf0] sm:$0xff]
    %v95 = vld [vmem:[#allocation2 + $0xf8] sm:$0xff]
    %v96 = vld [vmem:[#allocation2 + $0x100] sm:$0xff]
    %v97 = vld [vmem:[#allocation2 + $0x108] sm:$0xff]
    %v98 = vld [vmem:[#allocation2 + $0x110] sm:$0xff]
    %v99 = vld [vmem:[#allocation2 + $0x118] sm:$0xff]
    %v100 = vld [vmem:[#allocation2 + $0x120] sm:$0xff]
    %v101 = vld [vmem:[#allocation2 + $0x128] sm:$0xff]
    %v102 = vld [vmem:[#allocation2 + $0x130] sm:$0xff]
    %v103 = vld [vmem:[#allocation2 + $0x138] sm:$0xff]
    %v104 = vld [vmem:[#allocation2 + $0x140] sm:$0xff]
    %v105 = vld [vmem:[#allocation2 + $0x148] sm:$0xff]
    %v106 = vld [vmem:[#allocation2 + $0x150] sm:$0xff]
    %v107 = vld [vmem:[#allocation2 + $0x158] sm:$0xff]
    %v108 = vld [vmem:[#allocation2 + $0x160] sm:$0x11]
    %v109 = vld [vmem:[#allocation2 + $0x168] sm:$0x11]
    %v110 = vld [vmem:[%s2] sm:$0xf]
    %v112 = vperm.slane %v110, 0
    %v113 = vperm.slane %v110, 1
    %v114 = vperm.slane %v110, 2
    %v115 = vperm.slane %v110, 3
    %v166 = vunpack.c.l.b16 %v64
    %v167 = vunpack.c.h.b16 %v64
    %v168 = vunpack.c.l.b16 %v65
    %v169 = vunpack.c.h.b16 %v65
    %v170 = vunpack.c.l.b16 %v66
    %v171 = vunpack.c.h.b16 %v66
    %v172 = vunpack.c.l.b16 %v67
    %v173 = vunpack.c.h.b16 %v67
    %v174 = vunpack.c.l.b16 %v68
    %v175 = vunpack.c.h.b16 %v68
    %v176 = vunpack.c.l.b16 %v69
    %v177 = vunpack.c.h.b16 %v69
    %v178 = vunpack.c.l.b16 %v70
    %v179 = vunpack.c.h.b16 %v70
    %v180 = vunpack.c.l.b16 %v71
    %v181 = vunpack.c.h.b16 %v71
    %v182 = vunpack.c.l.b16 %v72
    %v183 = vunpack.c.h.b16 %v72
    %v184 = vunpack.c.l.b16 %v73
    %v185 = vunpack.c.h.b16 %v73
    %v186 = vunpack.c.l.b16 %v74
    %v187 = vunpack.c.h.b16 %v74
    %v188 = vunpack.c.l.b16 %v75
    %v189 = vunpack.c.h.b16 %v75
    %v190 = vunpack.c.l.b16 %v76
    %v191 = vunpack.c.h.b16 %v76
    %v192 = vunpack.c.l.b16 %v77
    %v193 = vunpack.c.h.b16 %v77
    %v194 = vunpack.c.l.b16 %v78
    %v195 = vunpack.c.h.b16 %v78
    %v196 = vunpack.c.l.b16 %v79
    %v197 = vunpack.c.h.b16 %v79
    %v198 = vunpack.c.l.b16 %v80
    %v199 = vunpack.c.h.b16 %v80
    %v200 = vunpack.c.l.b16 %v81
    %v201 = vunpack.c.h.b16 %v81
    %v202 = vunpack.c.l.b16 %v82
    %v203 = vunpack.c.h.b16 %v82
    %v204 = vunpack.c.l.b16 %v83
    %v205 = vunpack.c.h.b16 %v83
    %v206 = vunpack.c.l.b16 %v84
    %v207 = vunpack.c.h.b16 %v84
    %v208 = vunpack.c.l.b16 %v85
    %v209 = vunpack.c.h.b16 %v85
    %v210 = vunpack.c.l.b16 %v86
    %v211 = vunpack.c.h.b16 %v86
    %v212 = vunpack.c.l.b16 %v87
    %v213 = vunpack.c.h.b16 %v87
    %v214 = vunpack.c.l.b16 %v88
    %v215 = vunpack.c.h.b16 %v88
    %v216 = vunpack.c.l.b16 %v89
    %v217 = vunpack.c.h.b16 %v89
    %v218 = vunpack.c.l.b16 %v90
    %v219 = vunpack.c.h.b16 %v90
    %v220 = vunpack.c.l.b16 %v91
    %v221 = vunpack.c.h.b16 %v91
    %v222 = vunpack.c.l.b16 %v92
    %v223 = vunpack.c.h.b16 %v92
    %v224 = vunpack.c.l.b16 %v93
    %v225 = vunpack.c.h.b16 %v93
    %v226 = vunpack.c.l.b16 %v94
    %v227 = vunpack.c.h.b16 %v94
    %v228 = vunpack.c.l.b16 %v95
    %v229 = vunpack.c.h.b16 %v95
    %v230 = vunpack.c.l.b16 %v96
    %v231 = vunpack.c.h.b16 %v96
    %v232 = vunpack.c.l.b16 %v97
    %v233 = vunpack.c.h.b16 %v97
    %v234 = vunpack.c.l.b16 %v98
    %v235 = vunpack.c.h.b16 %v98
    %v236 = vunpack.c.l.b16 %v99
    %v237 = vunpack.c.h.b16 %v99
    %v238 = vunpack.c.l.b16 %v100
    %v239 = vunpack.c.h.b16 %v100
    %v240 = vunpack.c.l.b16 %v101
    %v241 = vunpack.c.h.b16 %v101
    %v242 = vunpack.c.l.b16 %v102
    %v243 = vunpack.c.h.b16 %v102
    %v244 = vunpack.c.l.b16 %v103
    %v245 = vunpack.c.h.b16 %v103
    %v246 = vunpack.c.l.b16 %v104
    %v247 = vunpack.c.h.b16 %v104
    %v248 = vunpack.c.l.b16 %v105
    %v249 = vunpack.c.h.b16 %v105
    %v250 = vunpack.c.l.b16 %v106
    %v251 = vunpack.c.h.b16 %v106
    %v252 = vunpack.c.l.b16 %v107
    %v253 = vunpack.c.h.b16 %v107
    %v254 = vunpack.c.l.b16 %v108
    %v255 = vunpack.c.h.b16 %v108
    %v256 = vunpack.c.l.b16 %v109
    %v257 = vunpack.c.h.b16 %v109
    %v258 = vpack.c.b16 %v170, %v166
    %v259 = vpack.c.b16 %v171, %v167
    %v260 = vpack.c.b16 %v172, %v168
    %v261 = vpack.c.b16 %v173, %v169
    %v262 = vpack.c.b16 %v178, %v174
    %v263 = vpack.c.b16 %v179, %v175
    %v264 = vpack.c.b16 %v180, %v176
    %v265 = vpack.c.b16 %v181, %v177
    %v266 = vpack.c.b16 %v186, %v182
    %v267 = vpack.c.b16 %v187, %v183
    %v268 = vpack.c.b16 %v188, %v184
    %v269 = vpack.c.b16 %v189, %v185
    %v270 = vpack.c.b16 %v194, %v190
    %v271 = vpack.c.b16 %v195, %v191
    %v272 = vpack.c.b16 %v196, %v192
    %v273 = vpack.c.b16 %v197, %v193
    %v274 = vpack.c.b16 %v202, %v198
    %v275 = vpack.c.b16 %v203, %v199
    %v276 = vpack.c.b16 %v204, %v200
    %v277 = vpack.c.b16 %v205, %v201
    %v278 = vpack.c.b16 %v210, %v206
    %v279 = vpack.c.b16 %v211, %v207
    %v280 = vpack.c.b16 %v212, %v208
    %v281 = vpack.c.b16 %v213, %v209
    %v282 = vpack.c.b16 %v218, %v214
    %v283 = vpack.c.b16 %v219, %v215
    %v284 = vpack.c.b16 %v220, %v216
    %v285 = vpack.c.b16 %v221, %v217
    %v286 = vpack.c.b16 %v226, %v222
    %v287 = vpack.c.b16 %v227, %v223
    %v288 = vpack.c.b16 %v228, %v224
    %v289 = vpack.c.b16 %v229, %v225
    %v290 = vpack.c.b16 %v234, %v230
    %v291 = vpack.c.b16 %v235, %v231
    %v292 = vpack.c.b16 %v236, %v232
    %v293 = vpack.c.b16 %v237, %v233
    %v294 = vpack.c.b16 %v242, %v238
    %v295 = vpack.c.b16 %v243, %v239
    %v296 = vpack.c.b16 %v244, %v240
    %v297 = vpack.c.b16 %v245, %v241
    %v298 = vpack.c.b16 %v250, %v246
    %v299 = vpack.c.b16 %v251, %v247
    %v300 = vpack.c.b16 %v252, %v248
    %v301 = vpack.c.b16 %v253, %v249
    %v302 = vpack.c.b16 %v254, %v254
    %v303 = vpack.c.b16 %v255, %v255
    %v304 = vpack.c.b16 %v256, %v256
    %v305 = vpack.c.b16 %v257, %v257
    %vm350 = vcmask 408576
    %v352 = vsel %vm350, %v63, 0
    %vm354 = vcmask 1040384
    %v356 = vsel %vm354, %v302, 0
    %v359 = vsel %vm354, %v303, 0
    %v362 = vsel %vm354, %v304, 0
    %v365 = vsel %vm354, %v305, 0
    %367 = vmatpush.bf16.msra.mxu0 %v286
    %368 = vmatpush.bf16.msra.mxu0 %v282
    %369 = vmatpush.bf16.msra.mxu0 %v278
    %370 = vmatpush.bf16.msra.mxu0 %v274
    %371 = vmatpush.bf16.msra.mxu0 %v270
    %372 = vmatpush.bf16.msra.mxu0 %v266
    %373 = vmatpush.bf16.msra.mxu0 %v262
    %374 = vmatpush.bf16.msra.mxu0 %v258
    %375 = vmatmul.bf16.gmra.mxu0 %v62
    %v376 = vpop.f32.mrf.mxu0
    %v377 = vadd.f32 %v112, %v376
    %v378 = vpop.f32.mrf.mxu0
    %379 = vdwg.mxu0
    %380 = vmatpush.bf16.msra.mxu0 0
    %381 = vmatpush.bf16.msra.mxu0 0
    %382 = vmatpush.bf16.msra.mxu0 0
    %383 = vmatpush.bf16.msra.mxu0 0
    %384 = vmatpush.bf16.msra.mxu0 %v356
    %385 = vmatpush.bf16.msra.mxu0 %v298
    %386 = vmatpush.bf16.msra.mxu0 %v294
    %387 = vmatpush.bf16.msra.mxu0 %v290
    %388 = vmatmul.bf16.gmra.mxu0 %v352
    %v389 = vpop.f32.mrf.mxu0
    %v390 = vadd.f32 %v377, %v389
    %v391 = vpop.f32.mrf.mxu0
    %392 = vdwg.mxu0
    %393 = vmatpush.bf16.msra.mxu0 %v287
    %394 = vmatpush.bf16.msra.mxu0 %v283
    %395 = vmatpush.bf16.msra.mxu0 %v279
    %396 = vmatpush.bf16.msra.mxu0 %v275
    %397 = vmatpush.bf16.msra.mxu0 %v271
    %398 = vmatpush.bf16.msra.mxu0 %v267
    %399 = vmatpush.bf16.msra.mxu0 %v263
    %400 = vmatpush.bf16.msra.mxu0 %v259
    %401 = vmatmul.bf16.gmra.mxu0 %v62
    %v402 = vpop.f32.mrf.mxu0
    %v403 = vadd.f32 %v113, %v402
    %v404 = vpop.f32.mrf.mxu0
    %405 = vdwg.mxu0
    %406 = vmatpush.bf16.msra.mxu0 0
    %407 = vmatpush.bf16.msra.mxu0 0
    %408 = vmatpush.bf16.msra.mxu0 0
    %409 = vmatpush.bf16.msra.mxu0 0
    %410 = vmatpush.bf16.msra.mxu0 %v359
    %411 = vmatpush.bf16.msra.mxu0 %v299
    %412 = vmatpush.bf16.msra.mxu0 %v295
    %413 = vmatpush.bf16.msra.mxu0 %v291
    %414 = vmatmul.bf16.gmra.mxu0 %v352
    %v415 = vpop.f32.mrf.mxu0
    %v416 = vadd.f32 %v403, %v415
    %v417 = vpop.f32.mrf.mxu0
    %418 = vdwg.mxu0
    %419 = vmatpush.bf16.msra.mxu0 %v288
    %420 = vmatpush.bf16.msra.mxu0 %v284
    %421 = vmatpush.bf16.msra.mxu0 %v280
    %422 = vmatpush.bf16.msra.mxu0 %v276
    %423 = vmatpush.bf16.msra.mxu0 %v272
    %424 = vmatpush.bf16.msra.mxu0 %v268
    %425 = vmatpush.bf16.msra.mxu0 %v264
    %426 = vmatpush.bf16.msra.mxu0 %v260
    %427 = vmatmul.bf16.gmra.mxu0 %v62
    %v428 = vpop.f32.mrf.mxu0
    %v429 = vadd.f32 %v114, %v428
    %v430 = vpop.f32.mrf.mxu0
    %431 = vdwg.mxu0
    %432 = vmatpush.bf16.msra.mxu0 0
    %433 = vmatpush.bf16.msra.mxu0 0
    %434 = vmatpush.bf16.msra.mxu0 0
    %435 = vmatpush.bf16.msra.mxu0 0
    %436 = vmatpush.bf16.msra.mxu0 %v362
    %437 = vmatpush.bf16.msra.mxu0 %v300
    %438 = vmatpush.bf16.msra.mxu0 %v296
    %439 = vmatpush.bf16.msra.mxu0 %v292
    %440 = vmatmul.bf16.gmra.mxu0 %v352
    %v441 = vpop.f32.mrf.mxu0
    %v442 = vadd.f32 %v429, %v441
    %v443 = vpop.f32.mrf.mxu0
    %444 = vdwg.mxu0
    %445 = vmatpush.bf16.msra.mxu0 %v289
    %446 = vmatpush.bf16.msra.mxu0 %v285
    %447 = vmatpush.bf16.msra.mxu0 %v281
    %448 = vmatpush.bf16.msra.mxu0 %v277
    %449 = vmatpush.bf16.msra.mxu0 %v273
    %450 = vmatpush.bf16.msra.mxu0 %v269
    %451 = vmatpush.bf16.msra.mxu0 %v265
    %452 = vmatpush.bf16.msra.mxu0 %v261
    %453 = vmatmul.bf16.gmra.mxu0 %v62
    %v454 = vpop.f32.mrf.mxu0
    %v455 = vadd.f32 %v115, %v454
    %v456 = vpop.f32.mrf.mxu0
    %457 = vdwg.mxu0
    %458 = vmatpush.bf16.msra.mxu0 0
    %459 = vmatpush.bf16.msra.mxu0 0
    %460 = vmatpush.bf16.msra.mxu0 0
    %461 = vmatpush.bf16.msra.mxu0 0
    %462 = vmatpush.bf16.msra.mxu0 %v365
    %463 = vmatpush.bf16.msra.mxu0 %v301
    %464 = vmatpush.bf16.msra.mxu0 %v297
    %465 = vmatpush.bf16.msra.mxu0 %v293
    %466 = vmatmul.bf16.gmra.mxu0 %v352
    %v467 = vpop.f32.mrf.mxu0
    %v468 = vadd.f32 %v455, %v467
    %v469 = vpop.f32.mrf.mxu0
    %470 = vdwg.mxu0
    %v471 = vmax.f32 %v390, 0.0
    %v472 = vmax.f32 %v416, 0.0
    %v473 = vmax.f32 %v442, 0.0
    %v474 = vmax.f32 %v468, 0.0
    %v475 = vpack.c.bf16 %v471, %v471
    %v476 = vpack.c.bf16 %v472, %v472
    %v477 = vpack.c.bf16 %v473, %v473
    %v478 = vpack.c.bf16 %v474, %v474
    %v479 = vld [vmem:[#allocation5] sm:$0xff]
    %v480 = vld [vmem:[#allocation5 + $0x8] sm:$0xff]
    %v481 = vld [vmem:[#allocation5 + $0x10] sm:$0xff]
    %v482 = vld [vmem:[#allocation5 + $0x18] sm:$0xff]
    %v483 = vld [vmem:[#allocation5 + $0x20] sm:$0xff]
    %v484 = vld [vmem:[#allocation5 + $0x28] sm:$0xff]
    %v485 = vld [vmem:[#allocation5 + $0x30] sm:$0xff]
    %v486 = vld [vmem:[#allocation5 + $0x38] sm:$0xff]
    %v487 = vld [vmem:[#allocation5 + $0x40] sm:$0xff]
    %v488 = vld [vmem:[#allocation5 + $0x48] sm:$0xff]
    %v489 = vld [vmem:[#allocation5 + $0x50] sm:$0xff]
    %v490 = vld [vmem:[#allocation5 + $0x58] sm:$0xff]
    %v491 = vld [vmem:[#allocation5 + $0x60] sm:$0xff]
    %v492 = vld [vmem:[#allocation5 + $0x68] sm:$0xff]
    %v493 = vld [vmem:[#allocation5 + $0x70] sm:$0xff]
    %v494 = vld [vmem:[#allocation5 + $0x78] sm:$0xff]
    %v495 = vld [vmem:[#allocation5 + $0x80] sm:$0xff]
    %v496 = vld [vmem:[#allocation5 + $0x88] sm:$0xff]
    %v497 = vld [vmem:[#allocation5 + $0x90] sm:$0xff]
    %v498 = vld [vmem:[#allocation5 + $0x98] sm:$0xff]
    %v499 = vld [vmem:[#allocation5 + $0xa0] sm:$0xff]
    %v500 = vld [vmem:[#allocation5 + $0xa8] sm:$0xff]
    %v501 = vld [vmem:[#allocation5 + $0xb0] sm:$0xff]
    %v502 = vld [vmem:[#allocation5 + $0xb8] sm:$0xff]
    %v503 = vld [vmem:[#allocation5 + $0xc0] sm:$0xff]
    %v504 = vld [vmem:[#allocation5 + $0xc8] sm:$0xff]
    %v505 = vld [vmem:[#allocation5 + $0xd0] sm:$0xff]
    %v506 = vld [vmem:[#allocation5 + $0xd8] sm:$0xff]
    %v507 = vld [vmem:[#allocation5 + $0xe0] sm:$0xff]
    %v508 = vld [vmem:[#allocation5 + $0xe8] sm:$0xff]
    %v509 = vld [vmem:[#allocation5 + $0xf0] sm:$0xff]
    %v510 = vld [vmem:[#allocation5 + $0xf8] sm:$0xff]
    %v511 = vld [vmem:[#allocation5 + $0x100] sm:$0xff]
    %v512 = vld [vmem:[#allocation5 + $0x108] sm:$0xff]
    %v513 = vld [vmem:[#allocation5 + $0x110] sm:$0xff]
    %v514 = vld [vmem:[#allocation5 + $0x118] sm:$0xff]
    %v515 = vld [vmem:[#allocation5 + $0x120] sm:$0xff]
    %v516 = vld [vmem:[#allocation5 + $0x128] sm:$0xff]
    %v517 = vld [vmem:[#allocation5 + $0x130] sm:$0xff]
    %v518 = vld [vmem:[#allocation5 + $0x138] sm:$0xff]
    %v519 = vld [vmem:[#allocation5 + $0x140] sm:$0xff]
    %v520 = vld [vmem:[#allocation5 + $0x148] sm:$0xff]
    %v521 = vld [vmem:[#allocation5 + $0x150] sm:$0xff]
    %v522 = vld [vmem:[#allocation5 + $0x158] sm:$0xff]
    %v523 = vld [vmem:[#allocation5 + $0x160] sm:$0xff]
    %v524 = vld [vmem:[#allocation5 + $0x168] sm:$0xff]
    %v525 = vld [vmem:[#allocation5 + $0x170] sm:$0xff]
    %v526 = vld [vmem:[#allocation5 + $0x178] sm:$0xff]
    %v527 = vld [vmem:[#allocation5 + $0x180] sm:$0xff]
    %v528 = vld [vmem:[#allocation5 + $0x188] sm:$0xff]
    %v529 = vld [vmem:[#allocation5 + $0x190] sm:$0xff]
    %v530 = vld [vmem:[#allocation5 + $0x198] sm:$0xff]
    %v531 = vld [vmem:[#allocation5 + $0x1a0] sm:$0xff]
    %v532 = vld [vmem:[#allocation5 + $0x1a8] sm:$0xff]
    %v533 = vld [vmem:[#allocation5 + $0x1b0] sm:$0xff]
    %v534 = vld [vmem:[#allocation5 + $0x1b8] sm:$0xff]
    %v535 = vld [vmem:[#allocation5 + $0x1c0] sm:$0xff]
    %v536 = vld [vmem:[#allocation5 + $0x1c8] sm:$0xff]
    %v537 = vld [vmem:[#allocation5 + $0x1d0] sm:$0xff]
    %v538 = vld [vmem:[#allocation5 + $0x1d8] sm:$0xff]
    %v539 = vld [vmem:[#allocation5 + $0x1e0] sm:$0xff]
    %v540 = vld [vmem:[#allocation5 + $0x1e8] sm:$0xff]
    %v541 = vld [vmem:[#allocation5 + $0x1f0] sm:$0xff]
    %v542 = vld [vmem:[#allocation5 + $0x1f8] sm:$0xff]
    %v543 = vld [vmem:[%s4] sm:$0x3]
    %v545 = vperm.slane %v543, 0
    %v546 = vperm.slane %v543, 1
    %v613 = vunpack.c.l.b16 %v479
    %v614 = vunpack.c.h.b16 %v479
    %v615 = vunpack.c.l.b16 %v480
    %v616 = vunpack.c.h.b16 %v480
    %v617 = vunpack.c.l.b16 %v481
    %v618 = vunpack.c.h.b16 %v481
    %v619 = vunpack.c.l.b16 %v482
    %v620 = vunpack.c.h.b16 %v482
    %v621 = vunpack.c.l.b16 %v483
    %v622 = vunpack.c.h.b16 %v483
    %v623 = vunpack.c.l.b16 %v484
    %v624 = vunpack.c.h.b16 %v484
    %v625 = vunpack.c.l.b16 %v485
    %v626 = vunpack.c.h.b16 %v485
    %v627 = vunpack.c.l.b16 %v486
    %v628 = vunpack.c.h.b16 %v486
    %v629 = vunpack.c.l.b16 %v487
    %v630 = vunpack.c.h.b16 %v487
    %v631 = vunpack.c.l.b16 %v488
    %v632 = vunpack.c.h.b16 %v488
    %v633 = vunpack.c.l.b16 %v489
    %v634 = vunpack.c.h.b16 %v489
    %v635 = vunpack.c.l.b16 %v490
    %v636 = vunpack.c.h.b16 %v490
    %v637 = vunpack.c.l.b16 %v491
    %v638 = vunpack.c.h.b16 %v491
    %v639 = vunpack.c.l.b16 %v492
    %v640 = vunpack.c.h.b16 %v492
    %v641 = vunpack.c.l.b16 %v493
    %v642 = vunpack.c.h.b16 %v493
    %v643 = vunpack.c.l.b16 %v494
    %v644 = vunpack.c.h.b16 %v494
    %v645 = vunpack.c.l.b16 %v495
    %v646 = vunpack.c.h.b16 %v495
    %v647 = vunpack.c.l.b16 %v496
    %v648 = vunpack.c.h.b16 %v496
    %v649 = vunpack.c.l.b16 %v497
    %v650 = vunpack.c.h.b16 %v497
    %v651 = vunpack.c.l.b16 %v498
    %v652 = vunpack.c.h.b16 %v498
    %v653 = vunpack.c.l.b16 %v499
    %v654 = vunpack.c.h.b16 %v499
    %v655 = vunpack.c.l.b16 %v500
    %v656 = vunpack.c.h.b16 %v500
    %v657 = vunpack.c.l.b16 %v501
    %v658 = vunpack.c.h.b16 %v501
    %v659 = vunpack.c.l.b16 %v502
    %v660 = vunpack.c.h.b16 %v502
    %v661 = vunpack.c.l.b16 %v503
    %v662 = vunpack.c.h.b16 %v503
    %v663 = vunpack.c.l.b16 %v504
    %v664 = vunpack.c.h.b16 %v504
    %v665 = vunpack.c.l.b16 %v505
    %v666 = vunpack.c.h.b16 %v505
    %v667 = vunpack.c.l.b16 %v506
    %v668 = vunpack.c.h.b16 %v506
    %v669 = vunpack.c.l.b16 %v507
    %v670 = vunpack.c.h.b16 %v507
    %v671 = vunpack.c.l.b16 %v508
    %v672 = vunpack.c.h.b16 %v508
    %v673 = vunpack.c.l.b16 %v509
    %v674 = vunpack.c.h.b16 %v509
    %v675 = vunpack.c.l.b16 %v510
    %v676 = vunpack.c.h.b16 %v510
    %v677 = vunpack.c.l.b16 %v511
    %v678 = vunpack.c.h.b16 %v511
    %v679 = vunpack.c.l.b16 %v512
    %v680 = vunpack.c.h.b16 %v512
    %v681 = vunpack.c.l.b16 %v513
    %v682 = vunpack.c.h.b16 %v513
    %v683 = vunpack.c.l.b16 %v514
    %v684 = vunpack.c.h.b16 %v514
    %v685 = vunpack.c.l.b16 %v515
    %v686 = vunpack.c.h.b16 %v515
    %v687 = vunpack.c.l.b16 %v516
    %v688 = vunpack.c.h.b16 %v516
    %v689 = vunpack.c.l.b16 %v517
    %v690 = vunpack.c.h.b16 %v517
    %v691 = vunpack.c.l.b16 %v518
    %v692 = vunpack.c.h.b16 %v518
    %v693 = vunpack.c.l.b16 %v519
    %v694 = vunpack.c.h.b16 %v519
    %v695 = vunpack.c.l.b16 %v520
    %v696 = vunpack.c.h.b16 %v520
    %v697 = vunpack.c.l.b16 %v521
    %v698 = vunpack.c.h.b16 %v521
    %v699 = vunpack.c.l.b16 %v522
    %v700 = vunpack.c.h.b16 %v522
    %v701 = vunpack.c.l.b16 %v523
    %v702 = vunpack.c.h.b16 %v523
    %v703 = vunpack.c.l.b16 %v524
    %v704 = vunpack.c.h.b16 %v524
    %v705 = vunpack.c.l.b16 %v525
    %v706 = vunpack.c.h.b16 %v525
    %v707 = vunpack.c.l.b16 %v526
    %v708 = vunpack.c.h.b16 %v526
    %v709 = vunpack.c.l.b16 %v527
    %v710 = vunpack.c.h.b16 %v527
    %v711 = vunpack.c.l.b16 %v528
    %v712 = vunpack.c.h.b16 %v528
    %v713 = vunpack.c.l.b16 %v529
    %v714 = vunpack.c.h.b16 %v529
    %v715 = vunpack.c.l.b16 %v530
    %v716 = vunpack.c.h.b16 %v530
    %v717 = vunpack.c.l.b16 %v531
    %v718 = vunpack.c.h.b16 %v531
    %v719 = vunpack.c.l.b16 %v532
    %v720 = vunpack.c.h.b16 %v532
    %v721 = vunpack.c.l.b16 %v533
    %v722 = vunpack.c.h.b16 %v533
    %v723 = vunpack.c.l.b16 %v534
    %v724 = vunpack.c.h.b16 %v534
    %v725 = vunpack.c.l.b16 %v535
    %v726 = vunpack.c.h.b16 %v535
    %v727 = vunpack.c.l.b16 %v536
    %v728 = vunpack.c.h.b16 %v536
    %v729 = vunpack.c.l.b16 %v537
    %v730 = vunpack.c.h.b16 %v537
    %v731 = vunpack.c.l.b16 %v538
    %v732 = vunpack.c.h.b16 %v538
    %v733 = vunpack.c.l.b16 %v539
    %v734 = vunpack.c.h.b16 %v539
    %v735 = vunpack.c.l.b16 %v540
    %v736 = vunpack.c.h.b16 %v540
    %v737 = vunpack.c.l.b16 %v541
    %v738 = vunpack.c.h.b16 %v541
    %v739 = vunpack.c.l.b16 %v542
    %v740 = vunpack.c.h.b16 %v542
    %v741 = vpack.c.b16 %v615, %v613
    %v742 = vpack.c.b16 %v616, %v614
    %v743 = vpack.c.b16 %v619, %v617
    %v744 = vpack.c.b16 %v620, %v618
    %v745 = vpack.c.b16 %v623, %v621
    %v746 = vpack.c.b16 %v624, %v622
    %v747 = vpack.c.b16 %v627, %v625
    %v748 = vpack.c.b16 %v628, %v626
    %v749 = vpack.c.b16 %v631, %v629
    %v750 = vpack.c.b16 %v632, %v630
    %v751 = vpack.c.b16 %v635, %v633
    %v752 = vpack.c.b16 %v636, %v634
    %v753 = vpack.c.b16 %v639, %v637
    %v754 = vpack.c.b16 %v640, %v638
    %v755 = vpack.c.b16 %v643, %v641
    %v756 = vpack.c.b16 %v644, %v642
    %v757 = vpack.c.b16 %v647, %v645
    %v758 = vpack.c.b16 %v648, %v646
    %v759 = vpack.c.b16 %v651, %v649
    %v760 = vpack.c.b16 %v652, %v650
    %v761 = vpack.c.b16 %v655, %v653
    %v762 = vpack.c.b16 %v656, %v654
    %v763 = vpack.c.b16 %v659, %v657
    %v764 = vpack.c.b16 %v660, %v658
    %v765 = vpack.c.b16 %v663, %v661
    %v766 = vpack.c.b16 %v664, %v662
    %v767 = vpack.c.b16 %v667, %v665
    %v768 = vpack.c.b16 %v668, %v666
    %v769 = vpack.c.b16 %v671, %v669
    %v770 = vpack.c.b16 %v672, %v670
    %v771 = vpack.c.b16 %v675, %v673
    %v772 = vpack.c.b16 %v676, %v674
    %v773 = vpack.c.b16 %v679, %v677
    %v774 = vpack.c.b16 %v680, %v678
    %v775 = vpack.c.b16 %v683, %v681
    %v776 = vpack.c.b16 %v684, %v682
    %v777 = vpack.c.b16 %v687, %v685
    %v778 = vpack.c.b16 %v688, %v686
    %v779 = vpack.c.b16 %v691, %v689
    %v780 = vpack.c.b16 %v692, %v690
    %v781 = vpack.c.b16 %v695, %v693
    %v782 = vpack.c.b16 %v696, %v694
    %v783 = vpack.c.b16 %v699, %v697
    %v784 = vpack.c.b16 %v700, %v698
    %v785 = vpack.c.b16 %v703, %v701
    %v786 = vpack.c.b16 %v704, %v702
    %v787 = vpack.c.b16 %v707, %v705
    %v788 = vpack.c.b16 %v708, %v706
    %v789 = vpack.c.b16 %v711, %v709
    %v790 = vpack.c.b16 %v712, %v710
    %v791 = vpack.c.b16 %v715, %v713
    %v792 = vpack.c.b16 %v716, %v714
    %v793 = vpack.c.b16 %v719, %v717
    %v794 = vpack.c.b16 %v720, %v718
    %v795 = vpack.c.b16 %v723, %v721
    %v796 = vpack.c.b16 %v724, %v722
    %v797 = vpack.c.b16 %v727, %v725
    %v798 = vpack.c.b16 %v728, %v726
    %v799 = vpack.c.b16 %v731, %v729
    %v800 = vpack.c.b16 %v732, %v730
    %v801 = vpack.c.b16 %v735, %v733
    %v802 = vpack.c.b16 %v736, %v734
    %v803 = vpack.c.b16 %v739, %v737
    %v804 = vpack.c.b16 %v740, %v738
    %869 = vmatpush.bf16.msra.mxu0 %v755
    %870 = vmatpush.bf16.msra.mxu0 %v753
    %871 = vmatpush.bf16.msra.mxu0 %v751
    %872 = vmatpush.bf16.msra.mxu0 %v749
    %873 = vmatpush.bf16.msra.mxu0 %v747
    %874 = vmatpush.bf16.msra.mxu0 %v745
    %875 = vmatpush.bf16.msra.mxu0 %v743
    %876 = vmatpush.bf16.msra.mxu0 %v741
    %877 = vmatmul.bf16.gmra.mxu0 %v475
    %v878 = vpop.f32.mrf.mxu0
    %v879 = vadd.f32 %v545, %v878
    %v880 = vpop.f32.mrf.mxu0
    %881 = vdwg.mxu0
    %882 = vmatpush.bf16.msra.mxu0 %v771
    %883 = vmatpush.bf16.msra.mxu0 %v769
    %884 = vmatpush.bf16.msra.mxu0 %v767
    %885 = vmatpush.bf16.msra.mxu0 %v765
    %886 = vmatpush.bf16.msra.mxu0 %v763
    %887 = vmatpush.bf16.msra.mxu0 %v761
    %888 = vmatpush.bf16.msra.mxu0 %v759
    %889 = vmatpush.bf16.msra.mxu0 %v757
    %890 = vmatmul.bf16.gmra.mxu0 %v476
    %v891 = vpop.f32.mrf.mxu0
    %v892 = vadd.f32 %v879, %v891
    %v893 = vpop.f32.mrf.mxu0
    %894 = vdwg.mxu0
    %895 = vmatpush.bf16.msra.mxu0 %v787
    %896 = vmatpush.bf16.msra.mxu0 %v785
    %897 = vmatpush.bf16.msra.mxu0 %v783
    %898 = vmatpush.bf16.msra.mxu0 %v781
    %899 = vmatpush.bf16.msra.mxu0 %v779
    %900 = vmatpush.bf16.msra.mxu0 %v777
    %901 = vmatpush.bf16.msra.mxu0 %v775
    %902 = vmatpush.bf16.msra.mxu0 %v773
    %903 = vmatmul.bf16.gmra.mxu0 %v477
    %v904 = vpop.f32.mrf.mxu0
    %v905 = vadd.f32 %v892, %v904
    %v906 = vpop.f32.mrf.mxu0
    %907 = vdwg.mxu0
    %908 = vmatpush.bf16.msra.mxu0 %v803
    %909 = vmatpush.bf16.msra.mxu0 %v801
    %910 = vmatpush.bf16.msra.mxu0 %v799
    %911 = vmatpush.bf16.msra.mxu0 %v797
    %912 = vmatpush.bf16.msra.mxu0 %v795
    %913 = vmatpush.bf16.msra.mxu0 %v793
    %914 = vmatpush.bf16.msra.mxu0 %v791
    %915 = vmatpush.bf16.msra.mxu0 %v789
    %916 = vmatmul.bf16.gmra.mxu0 %v478
    %v917 = vpop.f32.mrf.mxu0
    %v918 = vadd.f32 %v905, %v917
    %v919 = vpop.f32.mrf.mxu0
    %920 = vdwg.mxu0
    %921 = vmatpush.bf16.msra.mxu0 %v756
    %922 = vmatpush.bf16.msra.mxu0 %v754
    %923 = vmatpush.bf16.msra.mxu0 %v752
    %924 = vmatpush.bf16.msra.mxu0 %v750
    %925 = vmatpush.bf16.msra.mxu0 %v748
    %926 = vmatpush.bf16.msra.mxu0 %v746
    %927 = vmatpush.bf16.msra.mxu0 %v744
    %928 = vmatpush.bf16.msra.mxu0 %v742
    %929 = vmatmul.bf16.gmra.mxu0 %v475
    %v930 = vpop.f32.mrf.mxu0
    %v931 = vadd.f32 %v546, %v930
    %v932 = vpop.f32.mrf.mxu0
    %933 = vdwg.mxu0
    %934 = vmatpush.bf16.msra.mxu0 %v772
    %935 = vmatpush.bf16.msra.mxu0 %v770
    %936 = vmatpush.bf16.msra.mxu0 %v768
    %937 = vmatpush.bf16.msra.mxu0 %v766
    %938 = vmatpush.bf16.msra.mxu0 %v764
    %939 = vmatpush.bf16.msra.mxu0 %v762
    %940 = vmatpush.bf16.msra.mxu0 %v760
    %941 = vmatpush.bf16.msra.mxu0 %v758
    %942 = vmatmul.bf16.gmra.mxu0 %v476
    %v943 = vpop.f32.mrf.mxu0
    %v944 = vadd.f32 %v931, %v943
    %v945 = vpop.f32.mrf.mxu0
    %946 = vdwg.mxu0
    %947 = vmatpush.bf16.msra.mxu0 %v788
    %948 = vmatpush.bf16.msra.mxu0 %v786
    %949 = vmatpush.bf16.msra.mxu0 %v784
    %950 = vmatpush.bf16.msra.mxu0 %v782
    %951 = vmatpush.bf16.msra.mxu0 %v780
    %952 = vmatpush.bf16.msra.mxu0 %v778
    %953 = vmatpush.bf16.msra.mxu0 %v776
    %954 = vmatpush.bf16.msra.mxu0 %v774
    %955 = vmatmul.bf16.gmra.mxu0 %v477
    %v956 = vpop.f32.mrf.mxu0
    %v957 = vadd.f32 %v944, %v956
    %v958 = vpop.f32.mrf.mxu0
    %959 = vdwg.mxu0
    %960 = vmatpush.bf16.msra.mxu0 %v804
    %961 = vmatpush.bf16.msra.mxu0 %v802
    %962 = vmatpush.bf16.msra.mxu0 %v800
    %963 = vmatpush.bf16.msra.mxu0 %v798
    %964 = vmatpush.bf16.msra.mxu0 %v796
    %965 = vmatpush.bf16.msra.mxu0 %v794
    %966 = vmatpush.bf16.msra.mxu0 %v792
    %967 = vmatpush.bf16.msra.mxu0 %v790
    %968 = vmatmul.bf16.gmra.mxu0 %v478
    %v969 = vpop.f32.mrf.mxu0
    %v970 = vadd.f32 %v957, %v969
    %v971 = vpop.f32.mrf.mxu0
    %972 = vdwg.mxu0
    %v973 = vmax.f32 %v918, 0.0
    %v974 = vmax.f32 %v970, 0.0
    %v975 = vpack.c.bf16 %v973, %v973
    %v976 = vpack.c.bf16 %v974, %v974
    %v977 = vld [vmem:[%s5] sm:$0xf]
    %v978 = vld [vmem:[%s5 + $0x4] sm:$0xf]
    %v979 = vld [vmem:[%s5 + $0x8] sm:$0xf]
    %v980 = vld [vmem:[%s5 + $0xc] sm:$0xf]
    %v981 = vld [vmem:[%s5 + $0x10] sm:$0xf]
    %v982 = vld [vmem:[%s5 + $0x14] sm:$0xf]
    %v983 = vld [vmem:[%s5 + $0x18] sm:$0xf]
    %v984 = vld [vmem:[%s5 + $0x1c] sm:$0xf]
    %v985 = vld [vmem:[%s5 + $0x20] sm:$0xf]
    %v986 = vld [vmem:[%s5 + $0x24] sm:$0xf]
    %v987 = vld [vmem:[%s5 + $0x28] sm:$0xf]
    %v988 = vld [vmem:[%s5 + $0x2c] sm:$0xf]
    %v989 = vld [vmem:[%s5 + $0x30] sm:$0xf]
    %v990 = vld [vmem:[%s5 + $0x34] sm:$0xf]
    %v991 = vld [vmem:[%s5 + $0x38] sm:$0xf]
    %v992 = vld [vmem:[%s5 + $0x3c] sm:$0xf]
    %v993 = vld [vmem:[%s5 + $0x40] sm:$0xf]
    %v994 = vld [vmem:[%s5 + $0x44] sm:$0xf]
    %v995 = vld [vmem:[%s5 + $0x48] sm:$0xf]
    %v996 = vld [vmem:[%s5 + $0x4c] sm:$0xf]
    %v997 = vld [vmem:[%s5 + $0x50] sm:$0xf]
    %v998 = vld [vmem:[%s5 + $0x54] sm:$0xf]
    %v999 = vld [vmem:[%s5 + $0x58] sm:$0xf]
    %v1000 = vld [vmem:[%s5 + $0x5c] sm:$0xf]
    %v1001 = vld [vmem:[%s5 + $0x60] sm:$0xf]
    %v1002 = vld [vmem:[%s5 + $0x64] sm:$0xf]
    %v1003 = vld [vmem:[%s5 + $0x68] sm:$0xf]
    %v1004 = vld [vmem:[%s5 + $0x6c] sm:$0xf]
    %v1005 = vld [vmem:[%s5 + $0x70] sm:$0xf]
    %v1006 = vld [vmem:[%s5 + $0x74] sm:$0xf]
    %v1007 = vld [vmem:[%s5 + $0x78] sm:$0xf]
    %v1008 = vld [vmem:[%s5 + $0x7c] sm:$0xf]
    %v1009 = vld [vmem:[%s6] sm:$0x1]
    %v1011 = vperm.slane %v1009, 0
    %v1045 = vunpack.c.l.b16 %v977
    %v1046 = vunpack.c.l.b16 %v978
    %v1047 = vunpack.c.l.b16 %v979
    %v1048 = vunpack.c.l.b16 %v980
    %v1049 = vunpack.c.l.b16 %v981
    %v1050 = vunpack.c.l.b16 %v982
    %v1051 = vunpack.c.l.b16 %v983
    %v1052 = vunpack.c.l.b16 %v984
    %v1053 = vunpack.c.l.b16 %v985
    %v1054 = vunpack.c.l.b16 %v986
    %v1055 = vunpack.c.l.b16 %v987
    %v1056 = vunpack.c.l.b16 %v988
    %v1057 = vunpack.c.l.b16 %v989
    %v1058 = vunpack.c.l.b16 %v990
    %v1059 = vunpack.c.l.b16 %v991
    %v1060 = vunpack.c.l.b16 %v992
    %v1061 = vunpack.c.l.b16 %v993
    %v1062 = vunpack.c.l.b16 %v994
    %v1063 = vunpack.c.l.b16 %v995
    %v1064 = vunpack.c.l.b16 %v996
    %v1065 = vunpack.c.l.b16 %v997
    %v1066 = vunpack.c.l.b16 %v998
    %v1067 = vunpack.c.l.b16 %v999
    %v1068 = vunpack.c.l.b16 %v1000
    %v1069 = vunpack.c.l.b16 %v1001
    %v1070 = vunpack.c.l.b16 %v1002
    %v1071 = vunpack.c.l.b16 %v1003
    %v1072 = vunpack.c.l.b16 %v1004
    %v1073 = vunpack.c.l.b16 %v1005
    %v1074 = vunpack.c.l.b16 %v1006
    %v1075 = vunpack.c.l.b16 %v1007
    %v1076 = vunpack.c.l.b16 %v1008
    %v1077 = vpack.c.b16 %v1046, %v1045
    %v1078 = vpack.c.b16 %v1048, %v1047
    %v1079 = vpack.c.b16 %v1050, %v1049
    %v1080 = vpack.c.b16 %v1052, %v1051
    %v1081 = vpack.c.b16 %v1054, %v1053
    %v1082 = vpack.c.b16 %v1056, %v1055
    %v1083 = vpack.c.b16 %v1058, %v1057
    %v1084 = vpack.c.b16 %v1060, %v1059
    %v1085 = vpack.c.b16 %v1062, %v1061
    %v1086 = vpack.c.b16 %v1064, %v1063
    %v1087 = vpack.c.b16 %v1066, %v1065
    %v1088 = vpack.c.b16 %v1068, %v1067
    %v1089 = vpack.c.b16 %v1070, %v1069
    %v1090 = vpack.c.b16 %v1072, %v1071
    %v1091 = vpack.c.b16 %v1074, %v1073
    %v1092 = vpack.c.b16 %v1076, %v1075
    %1109 = vmatpush.bf16.msra.mxu0 %v1084
    %1110 = vmatpush.bf16.msra.mxu0 %v1083
    %1111 = vmatpush.bf16.msra.mxu0 %v1082
    %1112 = vmatpush.bf16.msra.mxu0 %v1081
    %1113 = vmatpush.bf16.msra.mxu0 %v1080
    %1114 = vmatpush.bf16.msra.mxu0 %v1079
    %1115 = vmatpush.bf16.msra.mxu0 %v1078
    %1116 = vmatpush.bf16.msra.mxu0 %v1077
    %1117 = vmatmul.bf16.gmra.mxu0 %v975
    %v1118 = vpop.f32.mrf.mxu0
    %v1119 = vadd.f32 %v1011, %v1118
    %v1120 = vpop.f32.mrf.mxu0
    %1121 = vdwg.mxu0
    %1122 = vmatpush.bf16.msra.mxu0 %v1092
    %1123 = vmatpush.bf16.msra.mxu0 %v1091
    %1124 = vmatpush.bf16.msra.mxu0 %v1090
    %1125 = vmatpush.bf16.msra.mxu0 %v1089
    %1126 = vmatpush.bf16.msra.mxu0 %v1088
    %1127 = vmatpush.bf16.msra.mxu0 %v1087
    %1128 = vmatpush.bf16.msra.mxu0 %v1086
    %1129 = vmatpush.bf16.msra.mxu0 %v1085
    %1130 = vmatmul.bf16.gmra.mxu0 %v976
    %v1131 = vpop.f32.mrf.mxu0
    %v1132 = vadd.f32 %v1119, %v1131
    %v1133 = vpop.f32.mrf.mxu0
    %1134 = vdwg.mxu0
    %vm1135 = vcmask 64512
    %1136 = vst.msk [vmem:[#allocation7] sm:$0xff] %vm1135, %v1132
    // Predicated region
    $region38: #{tpu_custom_call.1} parent=1 // pred_check
      _
    $region39: #{tpu_custom_call.1} parent=1 // pred_check_branch
      %1138 = sbr.rel (0) target = $region41
    $region40: #{tpu_custom_call.1} parent=1 // pred_region
      %1140 = vsyncadd [#allocation4], 0
      %s1142 = sshll.u32 [#allocation7], 4
      %s1143 = int_to_ptr.vmem [resolvable:$true] %s1142
      %s1144 = sshll.u32 %s7, 4
      %s1145 = int_to_ptr.hbm [resolvable:$true] %s1144
      %1147 = dma.vmem_to_hbm [thread:$0]  %s1143, 128, %s1145, [#allocation4]
    $region41: #{tpu_custom_call.1} parent=1 // pred_fallthru
      _
    // Predicated region
    $region42: #{tpu_custom_call.1} parent=1 // pred_check
      _
    $region43: #{tpu_custom_call.1} parent=1 // pred_check_branch
      %1149 = sbr.rel (0) target = $region45
    $region44: #{tpu_custom_call.1} parent=1 // pred_region
      %1151 = dma.done [#allocation4], 128
    $region45: #{tpu_custom_call.1} parent=1 // pred_fallthru
      _
    %1152 = vsyncpa [#allocation3], 1
    %1153 = vsyncpa [#allocation6], 1
    %1154 = vsyncpa [#allocation4], 1

</llo_original>
